<compile_context>
chip_gen: v5e
topology: v5e:2x2
jax: 0.10.0
libtpu: 0.0.40
codegen_flags: <defaults>
</compile_context>

<pallas_src>
import functools

import jax
import jax.numpy as jnp
from jax.experimental import pallas as pl
from jax.experimental.pallas import tpu as pltpu


def _round_up(x, m):
    return (x + m - 1) // m * m


def _qllama_mlp_kernel(x_ref, wgu_ref, wd_ref, o_ref, acc_ref):
    # x_ref:   (tm, E)      row tile of flattened input (resident across F axis)
    # wgu_ref: (E, 2*tf)    [gate_tile_f | up_tile_f] interleaved weight tile
    # wd_ref:  (tf, E)      down_proj weight tile
    # o_ref:   (tm, E)      output tile (written on last F step)
    # acc_ref: (tm, E) f32  VMEM accumulator across the F axis
    f = pl.program_id(1)

    @pl.when(f == 0)
    def _():
        acc_ref[...] = jnp.zeros_like(acc_ref)

    tf = wgu_ref.shape[1] // 2

    # Single MXU matmul for gate+up projections, bf16 (or input dtype) operands,
    # f32 accumulation on the MXU.
    gu = jnp.dot(x_ref[...], wgu_ref[...], preferred_element_type=jnp.float32)
    g = gu[:, :tf]          # gate_proj(x) tile
    u = gu[:, tf:]          # up_proj(x) tile

    # LLaMA hidden_act = "silu":  silu(gate) * up
    a = (jax.nn.silu(g) * u).astype(wd_ref.dtype)

    # Partial down_proj for this F tile, accumulated in f32.
    acc_ref[...] += jnp.dot(a, wd_ref[...], preferred_element_type=jnp.float32)

    @pl.when(f == pl.num_programs(1) - 1)
    def _():
        o_ref[...] = acc_ref[...].astype(o_ref.dtype)


@functools.partial(jax.jit, static_argnames=("tm_target", "tf_target"))
def qllama_mlp_forward(x, w_gate, w_up, w_down, *, tm_target=256, tf_target=512):
    """x: (..., E).  Weights stored as (in, out): (E,F), (E,F), (F,E)
    (equivalent to PyTorch nn.Linear's x @ W.T with W of shape (out, in))."""
    orig_shape = x.shape
    E = orig_shape[-1]
    F = w_gate.shape[1]
    assert w_gate.shape == (E, F)
    assert w_up.shape == (E, F)
    assert w_down.shape == (F, E)

    x2d = x.reshape(-1, E)
    rows = x2d.shape[0]

    # Row tile: big (target 256) but never larger than needed; keep multiple of 8.
    tm = min(tm_target, _round_up(rows, 8))
    rows_pad = _round_up(rows, tm)
    if rows_pad != rows:
        x2d = jnp.pad(x2d, ((0, rows_pad - rows), (0, 0)))

    # FFN tile: stream F in tf-wide tiles (full F if it is already small).
    tf = tf_target if F >= tf_target else F
    F_pad = _round_up(F, tf)
    n_f = F_pad // tf
    if F_pad != F:
        # Zero padding on F is exact: padded down_proj rows are zero, so the
        # padded intermediate columns contribute nothing to the output.
        w_gate = jnp.pad(w_gate, ((0, 0), (0, F_pad - F)))
        w_up = jnp.pad(w_up, ((0, 0), (0, F_pad - F)))
        w_down = jnp.pad(w_down, ((0, F_pad - F), (0, 0)))

    # Interleave gate/up per F-tile: columns [f*2tf : (f+1)*2tf] hold
    # [gate_tile_f (tf cols) | up_tile_f (tf cols)].
    w_gu = jnp.concatenate(
        [w_gate.reshape(E, n_f, tf), w_up.reshape(E, n_f, tf)], axis=-1
    ).reshape(E, 2 * F_pad)

    grid = (rows_pad // tm, n_f)

    out2d = pl.pallas_call(
        _qllama_mlp_kernel,
        out_shape=jax.ShapeDtypeStruct((rows_pad, E), x.dtype),
        grid_spec=pltpu.PrefetchScalarGridSpec(
            num_scalar_prefetch=0,
            grid=grid,
            in_specs=[
                pl.BlockSpec((tm, E), lambda i, f: (i, 0)),        # x row tile
                pl.BlockSpec((E, 2 * tf), lambda i, f: (0, f)),    # gate|up tile
                pl.BlockSpec((tf, E), lambda i, f: (f, 0)),        # down tile
            ],
            out_specs=pl.BlockSpec((tm, E), lambda i, f: (i, 0)),
            scratch_shapes=[pltpu.VMEM((tm, E), jnp.float32)],
        ),
        compiler_params=pltpu.CompilerParams(
            dimension_semantics=("parallel", "arbitrary"),
            vmem_limit_bytes=64 * 1024 * 1024,
        ),
    )(x2d, w_gu, w_down)

    return out2d[:rows].reshape(orig_shape)


def _reference(x, w_gate, w_up, w_down):
    x2d = x.reshape(-1, x.shape[-1]).astype(jnp.float32)
    g = x2d @ w_gate.astype(jnp.float32)
    u = x2d @ w_up.astype(jnp.float32)
    a = jax.nn.silu(g) * u
    out = a @ w_down.astype(jnp.float32)
    return out.reshape(x.shape)


if __name__ == "__main__":
    key = jax.random.PRNGKey(0)
    batch, seq = 2, 8
    embed_dim, ffn_dim = 32, 64       # hidden_size, intermediate_size

    kx, kg, ku, kd = jax.random.split(key, 4)
    # bf16 end-to-end: the MXU consumes bf16 directly, accumulates in f32.
    x = jax.random.normal(kx, (batch, seq, embed_dim), dtype=jnp.bfloat16)
    w_gate = jax.random.normal(kg, (embed_dim, ffn_dim), dtype=jnp.bfloat16) * 0.05
    w_up = jax.random.normal(ku, (embed_dim, ffn_dim), dtype=jnp.bfloat16) * 0.05
    w_down = jax.random.normal(kd, (ffn_dim, embed_dim), dtype=jnp.bfloat16) * 0.05

    out = qllama_mlp_forward(x, w_gate, w_up, w_down)
    jax.block_until_ready(out)

    ref = _reference(x, w_gate, w_up, w_down)
    assert out.shape == x.shape
    assert jnp.allclose(out.astype(jnp.float32), ref, atol=2e-2, rtol=2e-2), \
        "mismatch vs reference"

    print("KERNEL_OK")
</pallas_src>

<mosaic_0001>
module attributes {stable_mosaic.version = 11 : i64} {
  func.func @_qllama_mlp_kernel(%arg0: i32, %arg1: i32, %arg2: memref<16x32xbf16, #tpu.memory_space<vmem>>, %arg3: memref<32x128xbf16, #tpu.memory_space<vmem>>, %arg4: memref<64x32xbf16, #tpu.memory_space<vmem>>, %arg5: memref<16x32xbf16, #tpu.memory_space<vmem>>, %arg6: memref<16x32xf32, #tpu.memory_space<vmem>>) attributes {dimension_semantics = [#tpu.dimension_semantics<parallel>, #tpu.dimension_semantics<arbitrary>], iteration_bounds = array<i64: 1, 1>, scalar_prefetch = 0 : i64, scratch_operands = 1 : i64, tpu.core_type = #tpu.core_type<tc>, window_params = [{transform_indices = @transform_0, window_bounds = array<i64: 16, 32>}, {transform_indices = @transform_1, window_bounds = array<i64: 32, 128>}, {transform_indices = @transform_2, window_bounds = array<i64: 64, 32>}, {transform_indices = @transform_3, window_bounds = array<i64: 16, 32>}]} {
    %c0_i32 = arith.constant 0 : i32
    %0 = arith.cmpi eq, %arg1, %c0_i32 : i32
    %1 = arith.extui %0 : i1 to i32
    %c0_i32_0 = arith.constant 0 : i32
    %2 = arith.cmpi ne, %1, %c0_i32_0 : i32
    scf.if %2 {
      %cst_14 = arith.constant 0.000000e+00 : f32
      %24 = vector.broadcast %cst_14 : f32 to vector<16x32xf32>
      %c0_15 = arith.constant 0 : index
      %c0_16 = arith.constant 0 : index
      %25 = vector.load %arg6[%c0_15, %c0_16] : memref<16x32xf32, #tpu.memory_space<vmem>>, vector<16x32xf32>
      tpu.vector_store %arg6[%c0_15, %c0_16], %24 {strides = array<i32>} : memref<16x32xf32, #tpu.memory_space<vmem>>, vector<16x32xf32>,
    } else {
    }
    %c0 = arith.constant 0 : index
    %c0_1 = arith.constant 0 : index
    %3 = vector.load %arg2[%c0, %c0_1] : memref<16x32xbf16, #tpu.memory_space<vmem>>, vector<16x32xbf16>
    %c0_2 = arith.constant 0 : index
    %c0_3 = arith.constant 0 : index
    %4 = vector.load %arg3[%c0_2, %c0_3] : memref<32x128xbf16, #tpu.memory_space<vmem>>, vector<32x128xbf16>
    %cst = arith.constant dense<0.000000e+00> : vector<16x128xf32>
    %5 = tpu.matmul %3, %4, %cst {dimension_numbers = #tpu.dot_dimension_numbers<[1], [0], [0], [1], [0, 0, 1, 1], [], []>} : vector<16x32xbf16>, vector<32x128xbf16>, vector<16x128xf32> -> vector<16x128xf32>
    %6 = vector.extract_strided_slice %5 {offsets = [0, 0], sizes = [16, 64], strides = [1, 1]} : vector<16x128xf32> to vector<16x64xf32>
    %7 = vector.extract_strided_slice %5 {offsets = [0, 64], sizes = [16, 64], strides = [1, 1]} : vector<16x128xf32> to vector<16x64xf32>
    %8 = arith.negf %6 : vector<16x64xf32>
    %9 = math.exp %8 : vector<16x64xf32>
    %cst_4 = arith.constant 1.000000e+00 : f32
    %10 = vector.broadcast %cst_4 : f32 to vector<16x64xf32>
    %11 = arith.addf %10, %9 : vector<16x64xf32>
    %12 = arith.divf %10, %11 : vector<16x64xf32>
    %13 = arith.mulf %6, %12 : vector<16x64xf32>
    %14 = arith.mulf %13, %7 : vector<16x64xf32>
    %15 = arith.truncf %14 : vector<16x64xf32> to vector<16x64xbf16>
    %c0_5 = arith.constant 0 : index
    %c0_6 = arith.constant 0 : index
    %16 = vector.load %arg6[%c0_5, %c0_6] : memref<16x32xf32, #tpu.memory_space<vmem>>, vector<16x32xf32>
    %c0_7 = arith.constant 0 : index
    %c0_8 = arith.constant 0 : index
    %17 = vector.load %arg4[%c0_7, %c0_8] : memref<64x32xbf16, #tpu.memory_space<vmem>>, vector<64x32xbf16>
    %cst_9 = arith.constant dense<0.000000e+00> : vector<16x32xf32>
    %18 = tpu.matmul %15, %17, %cst_9 {dimension_numbers = #tpu.dot_dimension_numbers<[1], [0], [0], [1], [0, 0, 1, 1], [], []>} : vector<16x64xbf16>, vector<64x32xbf16>, vector<16x32xf32> -> vector<16x32xf32>
    %19 = arith.addf %16, %18 : vector<16x32xf32>
    %c0_10 = arith.constant 0 : index
    %c0_11 = arith.constant 0 : index
    %20 = vector.load %arg6[%c0_10, %c0_11] : memref<16x32xf32, #tpu.memory_space<vmem>>, vector<16x32xf32>
    tpu.vector_store %arg6[%c0_10, %c0_11], %19 {strides = array<i32>} : memref<16x32xf32, #tpu.memory_space<vmem>>, vector<16x32xf32>,
    %c0_i32_12 = arith.constant 0 : i32
    %21 = arith.cmpi eq, %arg1, %c0_i32_12 : i32
    %22 = arith.extui %21 : i1 to i32
    %c0_i32_13 = arith.constant 0 : i32
    %23 = arith.cmpi ne, %22, %c0_i32_13 : i32
    scf.if %23 {
      %c0_14 = arith.constant 0 : index
      %c0_15 = arith.constant 0 : index
      %24 = vector.load %arg6[%c0_14, %c0_15] : memref<16x32xf32, #tpu.memory_space<vmem>>, vector<16x32xf32>
      %25 = arith.truncf %24 : vector<16x32xf32> to vector<16x32xbf16>
      %c0_16 = arith.constant 0 : index
      %c0_17 = arith.constant 0 : index
      %26 = vector.load %arg5[%c0_16, %c0_17] : memref<16x32xbf16, #tpu.memory_space<vmem>>, vector<16x32xbf16>
      tpu.vector_store %arg5[%c0_16, %c0_17], %25 {strides = array<i32>} : memref<16x32xbf16, #tpu.memory_space<vmem>>, vector<16x32xbf16>,
    } else {
    }
    return
  }
  func.func @transform_0(%arg0: i32, %arg1: i32) -> (i32, i32) {
    %c0_i32 = arith.constant 0 : i32
    %c0_i32_0 = arith.constant 0 : i32
    return %arg0, %c0_i32 : i32, i32
  }
  func.func @transform_1(%arg0: i32, %arg1: i32) -> (i32, i32) {
    %c0_i32 = arith.constant 0 : i32
    %c0_i32_0 = arith.constant 0 : i32
    return %c0_i32, %arg1 : i32, i32
  }
  func.func @transform_2(%arg0: i32, %arg1: i32) -> (i32, i32) {
    %c0_i32 = arith.constant 0 : i32
    %c0_i32_0 = arith.constant 0 : i32
    return %arg1, %c0_i32 : i32, i32
  }
  func.func @transform_3(%arg0: i32, %arg1: i32) -> (i32, i32) {
    %c0_i32 = arith.constant 0 : i32
    %c0_i32_0 = arith.constant 0 : i32
    return %arg0, %c0_i32 : i32, i32
  }
}

</mosaic_0001>

<llo_original>
// kernel: qllama_mlp_forward.1
$region0: #{qllama_mlp_forward.1}
  #allocation0 [shape = 'u32[]', space=smem, size = 0x4, offset = 0x4, fixed_abs, tag = 'smem constant byte address 0x4 - core index']
  #allocation1 [shape = 'u32[72,128]{1,0:T(1,128)}', space=vmem, size = 0x9000, scoped, tag = 'internal scratch']
  #allocation2 [shape = 'f32[16,32]{1,0:T(8,128)}', space=vmem, size = 0x2000, scoped, tag = 'scratch operand']
  %s0 = inlined_call_operand.vmem [shape: bf16[16,32], index: 0, kind: input, shape index: {}]
  %s1 = inlined_call_operand.vmem [shape: bf16[32,128], index: 1, kind: input, shape index: {}]
  %s2 = inlined_call_operand.vmem [shape: bf16[64,32], index: 2, kind: input, shape index: {}]
  %s3 = inlined_call_operand.hbm [shape: bf16[16,32], index: 3, kind: output, shape index: {}]
  %s4 = sld [smem:[#allocation0]]
  $region30: #{qllama_mlp_forward.1} parent=0
    _
  %s6 = ssub.s32 1, %s4
  %s7 = scalar_select 0, %s6, %s4
  $region1: #{qllama_mlp_forward.1} parent=0
    #allocation3 [shape = 'u8[4096]{0}', space=vmem, size = 0x1000, scoped, tag = 'output window, operand 0, single buffered']
    #allocation4 [shape = 's32[1]{0}', space=sflag, size = 0x4, scoped, tag = 'scoped memory for qllama_mlp_forward.1']
    %8 = vsyncpa [#allocation4], 0
    // Predicated region
    $region2: #{qllama_mlp_forward.1} parent=1 // pred_check
      _
    $region3: #{qllama_mlp_forward.1} parent=1 // pred_check_branch
      %10 = sbr.rel (0) target = $region5
    $region4: #{qllama_mlp_forward.1} parent=1 // pred_region
      _
    $region5: #{qllama_mlp_forward.1} parent=1 // pred_fallthru
      _
    // Predicated region
    $region6: #{qllama_mlp_forward.1} parent=1 // pred_check
      _
    $region7: #{qllama_mlp_forward.1} parent=1 // pred_check_branch
      %12 = sbr.rel (0) target = $region9
    $region8: #{qllama_mlp_forward.1} parent=1 // pred_region
      _
    $region9: #{qllama_mlp_forward.1} parent=1 // pred_fallthru
      _
    // Predicated region
    $region10: #{qllama_mlp_forward.1} parent=1 // pred_check
      _
    $region11: #{qllama_mlp_forward.1} parent=1 // pred_check_branch
      %14 = sbr.rel (0) target = $region13
    $region12: #{qllama_mlp_forward.1} parent=1 // pred_region
      _
    $region13: #{qllama_mlp_forward.1} parent=1 // pred_fallthru
      _
    %p16 = scmp.eq.s32.totalorder 0, 0
    // Predicated region
    $region14: #{qllama_mlp_forward.1} parent=1 // pred_check
      %p17 = pneg %p16
    $region15: #{qllama_mlp_forward.1} parent=1 // pred_check_branch
      %19 = sbr.rel (%p17) target = $region17
    $region16: #{qllama_mlp_forward.1} parent=1 // pred_region
      %vm20 = vcmask 261120
      %21 = vst.msk [vmem:[#allocation2] sm:$0xff] %vm20, 0.0
      %22 = vst.msk [vmem:[#allocation2 + $0x8] sm:$0xff] %vm20, 0.0
    $region17: #{qllama_mlp_forward.1} parent=1 // pred_fallthru
      _
    %v23 = vld [vmem:[%s0] sm:$0xf]
    %v24 = vld [vmem:[%s0 + $0x4] sm:$0xf]
    %v25 = vld [vmem:[%s1] sm:$0xf]
    %v26 = vld [vmem:[%s1 + $0x4] sm:$0xf]
    %v27 = vld [vmem:[%s1 + $0x8] sm:$0xf]
    %v28 = vld [vmem:[%s1 + $0xc] sm:$0xf]
    %v31 = vunpack.c.l.b16 %v23
    %v32 = vunpack.c.l.b16 %v24
    %v33 = vpack.c.b16 %v32, %v31
    %v38 = vunpack.c.l.b16 %v25
    %v39 = vunpack.c.l.b16 %v26
    %v40 = vunpack.c.l.b16 %v27
    %v41 = vunpack.c.l.b16 %v28
    %v42 = vpack.c.b16 %v39, %v38
    %v43 = vpack.c.b16 %v41, %v40
    %vm46 = vcmask 261120
    %v48 = vsel %vm46, %v33, 0
    %50 = vmatpush.bf16.msra.mxu0 0
    %51 = vmatpush.bf16.msra.mxu0 0
    %52 = vmatpush.bf16.msra.mxu0 0
    %53 = vmatpush.bf16.msra.mxu0 0
    %54 = vmatpush.bf16.msra.mxu0 0
    %55 = vmatpush.bf16.msra.mxu0 0
    %56 = vmatpush.bf16.msra.mxu0 %v43
    %57 = vmatpush.bf16.msra.mxu0 %v42
    %58 = vmatmul.bf16.gmra.mxu0 %v48
    %v59 = vpop.f32.mrf.mxu0
    %v60 = vadd.f32 0.0, %v59
    %v61 = vpop.f32.mrf.mxu0
    %v62 = vadd.f32 0.0, %v61
    %63 = vdwg.mxu0
    %v64 = vxor.u32 %v60, 2147483648
    %v65 = vxor.u32 %v62, 2147483648
    %v66 = vmul.f32 %v64, 1.442695
    %v67 = vpow.pop %v66
    %v68 = vmul.f32 %v65, 1.442695
    %v69 = vpow.pop %v68
    %v70 = vadd.f32 %v67, 1.0
    %v71 = vadd.f32 %v69, 1.0
    %v72 = vrcp.pop %v70
    %v73 = vmul.f32 %v70, %v72
    %v74 = vsub.f32 1.0, %v73
    %v75 = vmul.f32 %v72, %v74
    %v76 = vadd.f32 %v72, %v75
    %vm77 = vweird.f32 %v70
    %vm78 = vweird.f32 %v72
    %vm79 = vmor %vm77, %vm78
    %v80 = vsel %vm79, %v72, %v76
    %v81 = vand.u32 2147483647, %v70
    %vm82 = vcmp.eq.f32.partialorder %v81, 8.507059e+37
    %v83 = vand.u32 %v70, 2147483648
    %v84 = vor.u32 1.1754944e-38, %v83
    %v85 = vsel %vm82, %v84, %v80
    %v86 = vmul.f32 1.0, %v85
    %v87 = vrcp.pop %v71
    %v88 = vmul.f32 %v71, %v87
    %v89 = vsub.f32 1.0, %v88
    %v90 = vmul.f32 %v87, %v89
    %v91 = vadd.f32 %v87, %v90
    %vm92 = vweird.f32 %v71
    %vm93 = vweird.f32 %v87
    %vm94 = vmor %vm92, %vm93
    %v95 = vsel %vm94, %v87, %v91
    %v96 = vand.u32 2147483647, %v71
    %vm97 = vcmp.eq.f32.partialorder %v96, 8.507059e+37
    %v98 = vand.u32 %v71, 2147483648
    %v99 = vor.u32 1.1754944e-38, %v98
    %v100 = vsel %vm97, %v99, %v95
    %v101 = vmul.f32 1.0, %v100
    %v102 = vmul.f32 %v60, %v86
    %v103 = vmul.f32 %v62, %v101
    %106 = vrot.lane.b32.xlu0 %v60, 64
    %v107 = vpop.permute.xlu0 %106
    %108 = vrot.lane.b32.xlu0 %v62, 64
    %v109 = vpop.permute.xlu0 %108
    %v112 = vmul.f32 %v102, %v107
    %v113 = vmul.f32 %v103, %v109
    %v114 = vpack.c.bf16 %v113, %v112
    %v115 = vld [vmem:[#allocation2] sm:$0xff]
    %v116 = vld [vmem:[#allocation2 + $0x8] sm:$0xff]
    %v117 = vld [vmem:[%s2] sm:$0xf]
    %v118 = vld [vmem:[%s2 + $0x4] sm:$0xf]
    %v119 = vld [vmem:[%s2 + $0x8] sm:$0xf]
    %v120 = vld [vmem:[%s2 + $0xc] sm:$0xf]
    %v121 = vld [vmem:[%s2 + $0x10] sm:$0xf]
    %v122 = vld [vmem:[%s2 + $0x14] sm:$0xf]
    %v123 = vld [vmem:[%s2 + $0x18] sm:$0xf]
    %v124 = vld [vmem:[%s2 + $0x1c] sm:$0xf]
    %v133 = vunpack.c.l.b16 %v117
    %v134 = vunpack.c.l.b16 %v118
    %v135 = vunpack.c.l.b16 %v119
    %v136 = vunpack.c.l.b16 %v120
    %v137 = vunpack.c.l.b16 %v121
    %v138 = vunpack.c.l.b16 %v122
    %v139 = vunpack.c.l.b16 %v123
    %v140 = vunpack.c.l.b16 %v124
    %v141 = vpack.c.b16 %v134, %v133
    %v142 = vpack.c.b16 %v136, %v135
    %v143 = vpack.c.b16 %v138, %v137
    %v144 = vpack.c.b16 %v140, %v139
    %vm149 = vcmask 523264
    %v151 = vsel %vm149, %v114, 0
    %153 = vmatpush.bf16.msra.mxu0 0
    %154 = vmatpush.bf16.msra.mxu0 0
    %155 = vmatpush.bf16.msra.mxu0 0
    %156 = vmatpush.bf16.msra.mxu0 0
    %157 = vmatpush.bf16.msra.mxu0 %v144
    %158 = vmatpush.bf16.msra.mxu0 %v143
    %159 = vmatpush.bf16.msra.mxu0 %v142
    %160 = vmatpush.bf16.msra.mxu0 %v141
    %161 = vmatmul.bf16.gmra.mxu0 %v151
    %v162 = vpop.f32.mrf.mxu0
    %v163 = vadd.f32 0.0, %v162
    %v164 = vpop.f32.mrf.mxu0
    %v165 = vadd.f32 0.0, %v164
    %166 = vdwg.mxu0
    %v167 = vadd.f32 %v115, %v163
    %v168 = vadd.f32 %v116, %v165
    %169 = vst.msk [vmem:[#allocation2] sm:$0xff] %vm46, %v167
    %170 = vst.msk [vmem:[#allocation2 + $0x8] sm:$0xff] %vm46, %v168
    // Predicated region
    $region18: #{qllama_mlp_forward.1} parent=1 // pred_check
      %p171 = pneg %p16
    $region19: #{qllama_mlp_forward.1} parent=1 // pred_check_branch
      %173 = sbr.rel (%p171) target = $region21
    $region20: #{qllama_mlp_forward.1} parent=1 // pred_region
      %v174 = vld [vmem:[#allocation2] sm:$0xff]
      %v175 = vld [vmem:[#allocation2 + $0x8] sm:$0xff]
      %v176 = vpack.c.bf16 %v174, %v174
      %v177 = vpack.c.bf16 %v175, %v175
      %vm178 = vcmask 257024
      %179 = vst.msk [vmem:[#allocation3] sm:$0xf] %vm178, %v176
      %180 = vst.msk [vmem:[#allocation3 + $0x4] sm:$0xf] %vm178, %v177
    $region21: #{qllama_mlp_forward.1} parent=1 // pred_fallthru
      _
    // Predicated region
    $region22: #{qllama_mlp_forward.1} parent=1 // pred_check
      _
    $region23: #{qllama_mlp_forward.1} parent=1 // pred_check_branch
      %182 = sbr.rel (0) target = $region25
    $region24: #{qllama_mlp_forward.1} parent=1 // pred_region
      %184 = vsyncadd [#allocation4], 0
      %s185 = sshll.u32 [#allocation3], 4
      %s186 = int_to_ptr.vmem [resolvable:$true] %s185
      %s187 = sshll.u32 %s3, 4
      %s188 = int_to_ptr.hbm [resolvable:$true] %s187
      %193 = dma.vmem_to_hbm [thread:$0]  %s186, 128, %s188, [#allocation4], 64, 64, 4
    $region25: #{qllama_mlp_forward.1} parent=1 // pred_fallthru
      _
    // Predicated region
    $region26: #{qllama_mlp_forward.1} parent=1 // pred_check
      _
    $region27: #{qllama_mlp_forward.1} parent=1 // pred_check_branch
      %195 = sbr.rel (0) target = $region29
    $region28: #{qllama_mlp_forward.1} parent=1 // pred_region
      %197 = dma.done [#allocation4], 128
    $region29: #{qllama_mlp_forward.1} parent=1 // pred_fallthru
      _
    %198 = vsyncpa [#allocation4], 1

</llo_original>
